<compile_context>
chip_gen: v6e
topology: v6e:2x2x1
jax: 0.10.0
libtpu: 0.0.40
codegen_flags: <defaults>
</compile_context>

<pallas_src>
import jax
import jax.numpy as jnp
from jax.experimental import pallas as pl
from jax.experimental.pallas import tpu as pltpu


def _pair(v):
    if isinstance(v, (tuple, list)):
        return (int(v[0]), int(v[1]))
    return (int(v), int(v))


def _cdiv(a, b):
    return (a + b - 1) // b


def _round_up(x, m):
    return ((x + m - 1) // m) * m


def _tpu_info():
    """Generation-aware knobs: (vmem_capacity_bytes, wide_mxu, multi_tc)."""
    vmem_cap = 64 * 1024 * 1024            # conservative default (v7x-sized)
    try:
        vmem_cap = int(pltpu.get_tpu_info().vmem_capacity_bytes)
    except Exception:
        pass
    kind = ""
    try:
        kind = jax.devices()[0].device_kind.lower()
    except Exception:
        pass
    wide_mxu = any(t in kind for t in ("v6", "v7", "tpu7"))          # 256-wide MXU
    multi_tc = any(t in kind for t in ("v4", "v5p", "v7", "tpu7"))   # 2 TCs/chip
    return vmem_cap, wide_mxu, multi_tc


def _buffered_spec(block_shape, index_map, buffer_count):
    """BlockSpec with explicit pipeline depth; graceful fallback if unsupported."""
    if hasattr(pl, "Buffered"):
        try:
            return pl.BlockSpec(block_shape, index_map,
                                pipeline_mode=pl.Buffered(buffer_count))
        except TypeError:
            pass
    return pl.BlockSpec(block_shape, index_map)


# ---------------------------------------------------------------------------
# Kernel 1: one-time palettized-weight dequantization (gridded over rows).
#   lut_ref: (P,)          float32  SMEM (whole table, resident)
#   idx_ref: (tile_r, OCg) uint8    VMEM
#   w_ref:   (tile_r, OCg) bfloat16 VMEM
# ---------------------------------------------------------------------------
def _dequant_kernel(lut_ref, idx_ref, w_ref):
    n_palette = lut_ref.shape[0]
    idx = idx_ref[...].astype(jnp.int32)     # per-tile only (bounded by grid)

    def body(p, w):
        # scalar LUT read from SMEM, broadcast-selected over the whole tile
        return jnp.where(idx == p, lut_ref[p], w)

    w = jax.lax.fori_loop(0, n_palette, body,
                          jnp.zeros(idx.shape, jnp.float32))
    w_ref[...] = w.astype(w_ref.dtype)


def _dequantize_weights(lut1d, idx_flat, out_dtype=jnp.bfloat16, tile_r=1024):
    R, OCg = idx_flat.shape
    tile_r = min(int(tile_r), _round_up(R, 8))
    Rp = _round_up(R, tile_r)
    idx_p = jnp.pad(idx_flat, ((0, Rp - R), (0, 0)))
    w = pl.pallas_call(
        _dequant_kernel,
        out_shape=jax.ShapeDtypeStruct((Rp, OCg), out_dtype),
        grid_spec=pltpu.PrefetchScalarGridSpec(
            num_scalar_prefetch=0,
            grid=(Rp // tile_r,),
            in_specs=[
                pl.BlockSpec(memory_space=pltpu.MemorySpace.SMEM),  # LUT
                pl.BlockSpec((tile_r, OCg), lambda i: (i, 0)),      # u8 indices
            ],
            out_specs=pl.BlockSpec((tile_r, OCg), lambda i: (i, 0)),
        ),
        compiler_params=pltpu.CompilerParams(
            dimension_semantics=("parallel",)),
    )(lut1d, idx_p)
    return w[:R]


# ---------------------------------------------------------------------------
# Kernel 2a: hot path (weights fully resident) — bf16 GEMM + fused bias.
#   patches_ref: (tile_m, Kgp)  bf16
#   w_ref:       (Kgp, OCp)     bf16  (single-buffered; invariant along i)
#   bias_ref:    (1, OCp)       f32   (single-buffered)
#   out_ref:     (tile_m, OCp)  out_dtype
# ---------------------------------------------------------------------------
def _gemm_bias_kernel(patches_ref, w_ref, bias_ref, out_ref):
    acc = jnp.dot(patches_ref[...], w_ref[...],
                  preferred_element_type=jnp.float32)
    out_ref[...] = (acc + bias_ref[...]).astype(out_ref.dtype)


# ---------------------------------------------------------------------------
# Kernel 2b: hot path with a K-reduction grid axis (large Kg*OCp layers).
#   Accumulates in an f32 VMEM scratch; bias folded in at k == 0.
# ---------------------------------------------------------------------------
def _gemm_bias_ktiled_kernel(patches_ref, w_ref, bias_ref, out_ref, acc_ref):
    k = pl.program_id(2)

    @pl.when(k == 0)
    def _():
        acc_ref[...] = jnp.broadcast_to(bias_ref[...], acc_ref.shape)

    acc_ref[...] += jnp.dot(patches_ref[...], w_ref[...],
                            preferred_element_type=jnp.float32)

    @pl.when(k == pl.num_programs(2) - 1)
    def _():
        out_ref[...] = acc_ref[...].astype(out_ref.dtype)


# ---------------------------------------------------------------------------
# im2col for all groups at once (NHWC, bf16).  Flat-K order = (kh, kw, c).
# ---------------------------------------------------------------------------
def _im2col_nhwc(xg, KH, KW, stride, dilation, padding):
    """xg: (G, N, H, W, C) -> (G, N*OH*OW, KH*KW*C), OH, OW."""
    G, N, H, W, C = xg.shape
    sh, sw = stride
    dh, dw = dilation
    ph, pw = padding
    OH = (H + 2 * ph - dh * (KH - 1) - 1) // sh + 1
    OW = (W + 2 * pw - dw * (KW - 1) - 1) // sw + 1
    xp = jnp.pad(xg, ((0, 0), (0, 0), (ph, ph), (pw, pw), (0, 0)))
    cols = []
    for kh in range(KH):
        for kw in range(KW):
            sl = xp[:, :,
                    kh * dh: kh * dh + (OH - 1) * sh + 1: sh,
                    kw * dw: kw * dw + (OW - 1) * sw + 1: sw,
                    :]                                   # (G, N, OH, OW, C)
            cols.append(sl)
    p = jnp.stack(cols, axis=4)                          # (G, N, OH, OW, KH*KW, C)
    return p.reshape(G, N * OH * OW, KH * KW * C), OH, OW


# ---------------------------------------------------------------------------
# VMEM usage estimators (match the buffer counts actually requested).
# ---------------------------------------------------------------------------
def _simple_gemm_bytes(tile_m, kg, ocp, out_bytes):
    return (2 * tile_m * kg * 2            # patches bf16, double-buffered
            + kg * ocp * 2                 # weights bf16, single-buffered
            + ocp * 4                      # bias f32, single-buffered
            + 2 * tile_m * ocp * out_bytes)


def _ktiled_gemm_bytes(tile_m, tk, ocp, out_bytes):
    return (2 * tile_m * tk * 2            # patches bf16, double-buffered
            + 2 * tk * ocp * 2             # weights bf16 (change every K step)
            + ocp * 4                      # bias f32, single-buffered
            + tile_m * ocp * 4             # f32 accumulator scratch
            + 2 * tile_m * ocp * out_bytes)


def affine_palettized_conv2d(x, weight_idx, lookup_table, bias,
                             stride=1, dilation=1, groups=1, padding=0,
                             tile_m=512, out_dtype=jnp.float32):
    """Forward pass of AffinePalettizedConv2d.

    x:            (N, Cin, H, W)              float32, NCHW
    weight_idx:   (OC, Cin//groups, KH, KW)   uint8 palette indices
    lookup_table: (P,)                        float32 palette
    bias:         (OC,) or None               float32
    """
    stride = _pair(stride)
    dilation = _pair(dilation)
    padding = _pair(padding)
    N, Cin, H, W = x.shape
    OC, Cg, KH, KW = weight_idx.shape
    G = int(groups)
    assert Cin == Cg * G and OC % G == 0
    OCg = OC // G
    Kg = Cg * KH * KW

    vmem_cap, wide_mxu, multi_tc = _tpu_info()
    budget = int(vmem_cap * (0.5 if vmem_cap <= 64 * 1024 * 1024 else 0.7))

    lane_align = 256 if (wide_mxu and OCg >= 128) else 128
    OCp = _round_up(max(OCg, 128), lane_align)       # lane-dense out channels
    out_bytes = jnp.dtype(out_dtype).itemsize

    lut1d = lookup_table.astype(jnp.float32).reshape(-1)
    if bias is None:
        bias = jnp.zeros((OC,), jnp.float32)

    # ---- 1) dequantize the palettized weights ONCE (Pallas, gridded) ----
    # (OC, Cg, KH, KW) -> (G, Kg, OCg) with flat-K order (kh, kw, c).
    idx = weight_idx.reshape(G, OCg, Cg, KH, KW)
    idx = jnp.transpose(idx, (0, 3, 4, 2, 1)).reshape(G * Kg, OCg)
    w_all = _dequantize_weights(lut1d, idx).reshape(G, Kg, OCg)

    # ---- 2) im2col in NHWC bf16 (all groups in one pass over the input) ----
    x_nhwc = jnp.transpose(x, (0, 2, 3, 1)).astype(jnp.bfloat16)
    x_g = jnp.transpose(x_nhwc.reshape(N, H, W, G, Cg), (3, 0, 1, 2, 4))
    patches, OH, OW = _im2col_nhwc(x_g, KH, KW, stride, dilation, padding)
    M = patches.shape[1]

    # ---- 3) tiling: minimize Mpad waste, multi-TC split, VMEM budget ----
    n_m = max(1, _cdiv(M, int(tile_m)))
    if multi_tc and n_m < 2 and M > 128:
        n_m = 2                          # only pays off with 2 TensorCores
    tile_m = max(128, _round_up(_cdiv(M, n_m), 128))

    Kgp = _round_up(Kg, 128)             # unmasked patch loads / full MXU K
    use_ktile = Kgp * OCp * 2 > budget // 3
    if use_ktile:
        tk = Kgp
        while tk > 128 and 2 * tk * OCp * 2 > budget // 3:
            tk = max(128, _round_up(tk // 2, 128))
        Kgp = _round_up(Kgp, tk)
        while (tile_m > 128 and
               _ktiled_gemm_bytes(tile_m, tk, OCp, out_bytes) > budget):
            tile_m = max(128, _round_up(tile_m // 2, 128))
        used = _ktiled_gemm_bytes(tile_m, tk, OCp, out_bytes)
    else:
        tk = Kgp
        while (tile_m > 128 and
               _simple_gemm_bytes(tile_m, Kgp, OCp, out_bytes) > budget):
            tile_m = max(128, _round_up(tile_m // 2, 128))
        used = _simple_gemm_bytes(tile_m, Kgp, OCp, out_bytes)

    Mpad = _round_up(M, tile_m)
    vmem_limit = int(max(32 * 1024 * 1024,
                         min(vmem_cap - 12 * 1024 * 1024,
                             used + 16 * 1024 * 1024)))

    # ---- 4) zero-pad to lane/sublane-friendly shapes (pads are inert) ----
    patches = jnp.pad(patches, ((0, 0), (0, Mpad - M), (0, Kgp - Kg)))   # bf16
    w_all = jnp.pad(w_all, ((0, 0), (0, Kgp - Kg), (0, OCp - OCg)))      # bf16
    bias_all = jnp.pad(bias.astype(jnp.float32).reshape(G, 1, OCg),
                       ((0, 0), (0, 0), (0, OCp - OCg)))                 # f32

    # ---- 5) GEMM + bias on the MXU ----
    if not use_ktile:
        out_p = pl.pallas_call(
            _gemm_bias_kernel,
            out_shape=jax.ShapeDtypeStruct((G, Mpad, OCp), out_dtype),
            grid_spec=pltpu.PrefetchScalarGridSpec(
                num_scalar_prefetch=0,
                grid=(G, Mpad // tile_m),
                in_specs=[
                    pl.BlockSpec((None, tile_m, Kgp), lambda g, i: (g, i, 0)),
                    # weights / bias never change along i -> single buffer
                    _buffered_spec((None, Kgp, OCp), lambda g, i: (g, 0, 0), 1),
                    _buffered_spec((None, 1, OCp), lambda g, i: (g, 0, 0), 1),
                ],
                out_specs=pl.BlockSpec((None, tile_m, OCp),
                                       lambda g, i: (g, i, 0)),
            ),
            compiler_params=pltpu.CompilerParams(
                dimension_semantics=("parallel", "parallel"),
                vmem_limit_bytes=vmem_limit),
        )(patches, w_all, bias_all)
    else:
        out_p = pl.pallas_call(
            _gemm_bias_ktiled_kernel,
            out_shape=jax.ShapeDtypeStruct((G, Mpad, OCp), out_dtype),
            grid_spec=pltpu.PrefetchScalarGridSpec(
                num_scalar_prefetch=0,
                grid=(G, Mpad // tile_m, Kgp // tk),
                in_specs=[
                    pl.BlockSpec((None, tile_m, tk), lambda g, i, k: (g, i, k)),
                    pl.BlockSpec((None, tk, OCp), lambda g, i, k: (g, k, 0)),
                    _buffered_spec((None, 1, OCp), lambda g, i, k: (g, 0, 0), 1),
                ],
                out_specs=pl.BlockSpec((None, tile_m, OCp),
                                       lambda g, i, k: (g, i, 0)),
                scratch_shapes=[pltpu.VMEM((tile_m, OCp), jnp.float32)],
            ),
            compiler_params=pltpu.CompilerParams(
                dimension_semantics=("parallel", "parallel", "arbitrary"),
                vmem_limit_bytes=vmem_limit),
        )(patches, w_all, bias_all)

    # ---- 6) back to NCHW (module semantics) ----
    # TODO(synk): NHWC consumers could take out_p[:, :M, :OCg] directly and
    # skip this transpose (it re-reads/re-writes the full output in HBM).
    out = out_p[:, :M, :OCg].reshape(G, N, OH, OW, OCg)
    out = jnp.transpose(out, (1, 0, 4, 2, 3)).reshape(N, OC, OH, OW)
    return out.astype(x.dtype)


def _reference_conv(x, weight_idx, lookup_table, bias, stride, dilation,
                    groups, padding, operand_dtype=jnp.float32):
    stride = _pair(stride); dilation = _pair(dilation); padding = _pair(padding)
    full_w = lookup_table[weight_idx.astype(jnp.int32)]
    out = jax.lax.conv_general_dilated(
        x.astype(operand_dtype), full_w.astype(operand_dtype),
        window_strides=stride,
        padding=[(padding[0], padding[0]), (padding[1], padding[1])],
        rhs_dilation=dilation, feature_group_count=groups,
        dimension_numbers=('NCHW', 'OIHW', 'NCHW'),
        preferred_element_type=jnp.float32)
    if bias is not None:
        out = out + bias[None, :, None, None].astype(jnp.float32)
    return out


if __name__ == "__main__":
    key = jax.random.PRNGKey(0)
    k_x, k_w, k_b = jax.random.split(key, 3)

    # Small, conv-shaped example consistent with the module: NCHW input,
    # palettized 3x3 conv, 4 -> 8 channels, stride 1, padding 1, dilation 1.
    N, Cin, H, W = 2, 4, 16, 16
    OC, KH, KW = 8, 3, 3
    palette_size = 256
    stride, dilation, groups, padding = 1, 1, 1, 1

    x = jax.random.normal(k_x, (N, Cin, H, W), dtype=jnp.float32)

    # Palette constructed like the module: 0 prepended to a linspace.
    wmin, wmax = -1.0, 1.0
    lookup_table = jnp.concatenate(
        [jnp.zeros((1,), jnp.float32),
         jnp.linspace(wmin, wmax, palette_size - 1, dtype=jnp.float32)])
    weight_idx = jax.random.randint(
        k_w, (OC, Cin // groups, KH, KW), 0, palette_size, dtype=jnp.int32
    ).astype(jnp.uint8)
    bias = jax.random.normal(k_b, (OC,), dtype=jnp.float32)

    out = affine_palettized_conv2d(x, weight_idx, lookup_table, bias,
                                   stride=stride, dilation=dilation,
                                   groups=groups, padding=padding)
    out = jax.block_until_ready(out)

    # Reference 1: identical math (bf16 operands, f32 accumulation) -> tight tol.
    ref_bf16 = _reference_conv(x, weight_idx, lookup_table, bias,
                               stride, dilation, groups, padding,
                               operand_dtype=jnp.bfloat16)
    # Reference 2: the module's f32 conv (loose tol: the kernel intentionally
    # feeds bf16 operands to the MXU).
    ref_f32 = _reference_conv(x, weight_idx, lookup_table, bias,
                              stride, dilation, groups, padding,
                              operand_dtype=jnp.float32)

    assert out.shape == ref_f32.shape, (out.shape, ref_f32.shape)
    err_bf16 = float(jnp.max(jnp.abs(out - ref_bf16)))
    err_f32 = float(jnp.max(jnp.abs(out - ref_f32)))
    assert jnp.allclose(out, ref_bf16, atol=2e-3, rtol=2e-3), err_bf16
    assert jnp.allclose(out, ref_f32, atol=1e-1, rtol=1e-1), err_f32

    print("KERNEL_OK")
</pallas_src>

<mosaic_0001>
module attributes {stable_mosaic.version = 11 : i64} {
  func.func @_dequant_kernel(%arg0: i32, %arg1: memref<256xf32, #tpu.memory_space<smem>>, %arg2: memref<40x8xi8, #tpu.memory_space<vmem>>, %arg3: memref<40x8xbf16, #tpu.memory_space<vmem>>) attributes {dimension_semantics = [#tpu.dimension_semantics<parallel>], iteration_bounds = array<i64: 1>, scalar_prefetch = 0 : i64, scratch_operands = 0 : i64, tpu.core_type = #tpu.core_type<tc>, window_params = [{transform_indices = @transform_0, window_bounds = array<i64: 256>}, {transform_indices = @transform_1, window_bounds = array<i64: 40, 8>}, {transform_indices = @transform_2, window_bounds = array<i64: 40, 8>}]} {
    %c0 = arith.constant 0 : index
    %c0_0 = arith.constant 0 : index
    %0 = vector.load %arg2[%c0, %c0_0] : memref<40x8xi8, #tpu.memory_space<vmem>>, vector<40x8xi8>
    %1 = arith.extui %0 : vector<40x8xi8> to vector<40x8xi32>
    %cst = arith.constant 0.000000e+00 : f32
    %2 = vector.broadcast %cst : f32 to vector<40x8xf32>
    %c0_i32 = arith.constant 0 : i32
    %c256_i32 = arith.constant 256 : i32
    %3 = arith.addi %c0_i32, %c256_i32 : i32
    %c1_i32 = arith.constant 1 : i32
    %4 = scf.for %arg4 = %c0_i32 to %3 step %c1_i32 iter_args(%arg5 = %2) -> (vector<40x8xf32>)  : i32 {
      %7 = vector.broadcast %arg4 : i32 to vector<40x8xi32>
      %8 = arith.cmpi eq, %1, %7 : vector<40x8xi32>
      %9 = arith.index_cast %arg4 : i32 to index
      %10 = memref.load %arg1[%9] : memref<256xf32, #tpu.memory_space<smem>>
      %11 = vector.broadcast %10 : f32 to vector<40x8xf32>
      %12 = arith.select %8, %11, %arg5 : vector<40x8xi1>, vector<40x8xf32>
      scf.yield %12 : vector<40x8xf32>
    }
    %c256_i32_1 = arith.constant 256 : i32
    %5 = arith.truncf %4 : vector<40x8xf32> to vector<40x8xbf16>
    %c0_2 = arith.constant 0 : index
    %c0_3 = arith.constant 0 : index
    %6 = vector.load %arg3[%c0_2, %c0_3] : memref<40x8xbf16, #tpu.memory_space<vmem>>, vector<40x8xbf16>
    tpu.vector_store %arg3[%c0_2, %c0_3], %5 {strides = array<i32>} : memref<40x8xbf16, #tpu.memory_space<vmem>>, vector<40x8xbf16>,
    return
  }
  func.func @transform_0(%arg0: i32) -> i32 {
    %c0_i32 = arith.constant 0 : i32
    %c0_i32_0 = arith.constant 0 : i32
    return %c0_i32 : i32
  }
  func.func @transform_1(%arg0: i32) -> (i32, i32) {
    %c0_i32 = arith.constant 0 : i32
    %c0_i32_0 = arith.constant 0 : i32
    return %arg0, %c0_i32 : i32, i32
  }
  func.func @transform_2(%arg0: i32) -> (i32, i32) {
    %c0_i32 = arith.constant 0 : i32
    %c0_i32_0 = arith.constant 0 : i32
    return %arg0, %c0_i32 : i32, i32
  }
}

</mosaic_0001>

<llo_original>
// kernel: tpu_custom_call.1
$region0: #{tpu_custom_call.1}
  #allocation0 [shape = 'u32[]', space=smem, size = 0x4, offset = 0x4, fixed_abs, tag = 'smem constant byte address 0x4 - core index']
  #allocation1 [shape = 'u32[144,128]{1,0:T(1,128)}', space=vmem, size = 0x12000, scoped, tag = 'internal scratch']
  %s0 = inlined_call_operand.vmem [shape: f32[256], index: 0, kind: input, shape index: {}]
  %s1 = inlined_call_operand.vmem [shape: u8[40,8], index: 1, kind: input, shape index: {}]
  %s2 = inlined_call_operand.vmem [shape: bf16[40,8], index: 2, kind: output, shape index: {}]
  %s3 = sld [smem:[#allocation0]]
  $region29: #{tpu_custom_call.1} parent=0
    _
  %s5 = ssub.s32 1, %s3
  %s6 = scalar_select 0, %s5, %s3
  $region1: #{tpu_custom_call.1} parent=0
    #allocation2 [shape = 'u8[1024]{0}', space=smem, size = 0x400, scoped, tag = 'input window, operand 0, single buffered']
    #allocation3 [shape = 's32[1]{0}', space=sflag, size = 0x4, scoped, tag = 'scoped memory for tpu_custom_call.1']
    %7 = vsyncpa [#allocation3], 0
    // Predicated region
    $region2: #{tpu_custom_call.1} parent=1 // pred_check
      _
    $region3: #{tpu_custom_call.1} parent=1 // pred_check_branch
      %9 = sbr.rel (0) target = $region5
    $region4: #{tpu_custom_call.1} parent=1 // pred_region
      %s11 = ssub.s32 32, 32
      %12 = vsyncadd [#allocation3], %s11
      %s14 = sshll.u32 %s0, 4
      %s15 = int_to_ptr.vmem [resolvable:$true] %s14
      %17 = dma.vmem_to_smem %s15, 32, [#allocation2], [#allocation3]
    $region5: #{tpu_custom_call.1} parent=1 // pred_fallthru
      _
    // Predicated region
    $region6: #{tpu_custom_call.1} parent=1 // pred_check
      _
    $region7: #{tpu_custom_call.1} parent=1 // pred_check_branch
      %19 = sbr.rel (0) target = $region9
    $region8: #{tpu_custom_call.1} parent=1 // pred_region
      _
    $region9: #{tpu_custom_call.1} parent=1 // pred_fallthru
      _
    // Predicated region
    $region10: #{tpu_custom_call.1} parent=1 // pred_check
      _
    $region11: #{tpu_custom_call.1} parent=1 // pred_check_branch
      %21 = sbr.rel (0) target = $region13
    $region12: #{tpu_custom_call.1} parent=1 // pred_region
      %22 = dma.done [#allocation3], 32
    $region13: #{tpu_custom_call.1} parent=1 // pred_fallthru
      _
    %23 = sfence
    %v24 = vld [vmem:[%s1] sm:$0x3]
    %v25 = vld [vmem:[%s1 + $0x2] sm:$0x3]
    %v26 = vld [vmem:[%s1 + $0x4] sm:$0x3]
    %v27 = vld [vmem:[%s1 + $0x6] sm:$0x3]
    %v28 = vld [vmem:[%s1 + $0x8] sm:$0x3]
    %v29 = vunpack.c.0.s8 %v24
    %v30 = vunpack.c.0.s8 %v25
    %v31 = vunpack.c.0.s8 %v26
    %v32 = vunpack.c.0.s8 %v27
    %v33 = vunpack.c.0.s8 %v28
    %v34 = vand.u32 %v29, 255
    %v35 = vand.u32 %v30, 255
    %v36 = vand.u32 %v31, 255
    %v37 = vand.u32 %v32, 255
    %v38 = vand.u32 %v33, 255
    loop: start=0, step=1, limit=256
    $region14: #{tpu_custom_call.1} parent=1 // loop_pre_header
      _
    $region15: #{tpu_custom_call.1} parent=1 // loop_header
      %s40 = sphi 0, %s44
      %p41 = scmp.ge.s32.totalorder %s40, 256
      %v45 = vphi 0.0, %v58
      %v46 = vphi 0.0, %v59
      %v47 = vphi 0.0, %v60
      %v48 = vphi 0.0, %v61
      %v49 = vphi 0.0, %v62
    $region16: #{tpu_custom_call.1} parent=1 // loop_header_branch
      %43 = sbr.rel (%p41) target = $region20
    $region17: #{tpu_custom_call.1} parent=1 // loop_body
      %v50 = vstv %s40
      %vm51 = vcmp.eq.s32.totalorder %v34, %v50
      %vm52 = vcmp.eq.s32.totalorder %v35, %v50
      %vm53 = vcmp.eq.s32.totalorder %v36, %v50
      %vm54 = vcmp.eq.s32.totalorder %v37, %v50
      %vm55 = vcmp.eq.s32.totalorder %v38, %v50
      %s56 = sld [smem:[#allocation2 + %s40]]
      %v57 = vstv %s56
      %v58 = vsel %vm51, %v57, %v45
      %v59 = vsel %vm52, %v57, %v46
      %v60 = vsel %vm53, %v57, %v47
      %v61 = vsel %vm54, %v57, %v48
      %v62 = vsel %vm55, %v57, %v49
    $region18: #{tpu_custom_call.1} parent=1 // loop_footer
      %s44 = sadd.s32 1, %s40
    $region19: #{tpu_custom_call.1} parent=1 // loop_footer_branch
      %39 = sbr.rel target = $region15
    $region20: #{tpu_custom_call.1} parent=1 // loop_exit
      _
    %v63 = vpack.c.bf16 %v46, %v45
    %v64 = vpack.c.bf16 %v48, %v47
    %v65 = vpack.c.bf16 %v49, %v49
    %v69 = vunpack.c.l.b16 %v63
    %v70 = vunpack.c.h.b16 %v63
    %v71 = vunpack.c.l.b16 %v64
    %v72 = vunpack.c.h.b16 %v64
    %v73 = vunpack.c.l.b16 %v65
    %v74 = vpack.c.b16 %v69, %v69
    %v75 = vpack.c.b16 %v70, %v70
    %v76 = vpack.c.b16 %v71, %v71
    %v77 = vpack.c.b16 %v72, %v72
    %v78 = vpack.c.b16 %v73, %v73
    %vm84 = vcmask 60416
    %85 = vst.msk [vmem:[%s2] sm:$0xf] %vm84, %v74
    %86 = vst.msk [vmem:[%s2 + $0x4] sm:$0xf] %vm84, %v75
    %87 = vst.msk [vmem:[%s2 + $0x8] sm:$0xf] %vm84, %v76
    %88 = vst.msk [vmem:[%s2 + $0xc] sm:$0xf] %vm84, %v77
    %89 = vst.msk [vmem:[%s2 + $0x10] sm:$0xf] %vm84, %v78
    // Predicated region
    $region21: #{tpu_custom_call.1} parent=1 // pred_check
      _
    $region22: #{tpu_custom_call.1} parent=1 // pred_check_branch
      %91 = sbr.rel (0) target = $region24
    $region23: #{tpu_custom_call.1} parent=1 // pred_region
      _
    $region24: #{tpu_custom_call.1} parent=1 // pred_fallthru
      _
    // Predicated region
    $region25: #{tpu_custom_call.1} parent=1 // pred_check
      _
    $region26: #{tpu_custom_call.1} parent=1 // pred_check_branch
      %93 = sbr.rel (0) target = $region28
    $region27: #{tpu_custom_call.1} parent=1 // pred_region
      _
    $region28: #{tpu_custom_call.1} parent=1 // pred_fallthru
      _
    %94 = vsyncpa [#allocation3], 1

</llo_original>
